<compile_context>
chip_gen: v7x
topology: tpu7x:2x2x1
jax: 0.10.0
libtpu: 0.0.40
codegen_flags: <defaults>
</compile_context>

<pallas_src>
import functools

import jax
import jax.numpy as jnp
from jax.experimental import pallas as pl
from jax.experimental.pallas import tpu as pltpu


def _joints_mse_partial_kernel(*refs, rows, hw, use_target_weight,
                               mask_rows, mask_cols):
    """One grid step: partial sum of squared (weighted) diffs for a tile."""
    if use_target_weight:
        pred_ref, gt_ref, w_ref, out_ref = refs
    else:
        pred_ref, gt_ref, out_ref = refs

    d = pred_ref[...].astype(jnp.float32) - gt_ref[...].astype(jnp.float32)
    if use_target_weight:
        d = d * w_ref[...].astype(jnp.float32)   # (TR, 1) broadcast over TC

    tr, tc = d.shape
    if mask_rows or mask_cols:
        # Ragged tail block(s): zero contributions from rows/cols past the
        # logical extent (data there is unspecified, NOT guaranteed zero).
        mask = None
        if mask_rows:
            row_ids = pl.program_id(0) * tr + jax.lax.broadcasted_iota(
                jnp.int32, (tr, tc), 0)
            mask = row_ids < rows
        if mask_cols:
            col_ids = pl.program_id(1) * tc + jax.lax.broadcasted_iota(
                jnp.int32, (tr, tc), 1)
            cmask = col_ids < hw
            mask = cmask if mask is None else (mask & cmask)
        d = jnp.where(mask, d, 0.0)

    out_ref[0, 0] = jnp.sum(d * d)               # per-block partial (unscaled)


def joints_mse_loss(output, target, target_weight=None, *,
                    use_target_weight=True, tile_budget_bytes=4 << 20):
    """output/target: (B, J, H, W); target_weight: (B, J, 1). Returns scalar f32."""
    B, J, H, W = output.shape
    HW = H * W
    rows = B * J

    # Contiguous (free) reshapes — no transpose, no extra HBM traffic.
    pred = output.reshape(rows, HW)
    gt = target.reshape(rows, HW)

    elem_bytes = jnp.dtype(output.dtype).itemsize
    sub = max(8, 32 // elem_bytes)     # sublane multiple: f32->8, bf16->16, i8->32
    lane = 128

    if HW * elem_bytes * sub > tile_budget_bytes:
        # Even a minimal sublane-group of full-width rows exceeds the per-tile
        # budget (huge heatmaps): block the HW axis in multiples of 128 lanes.
        tc = max(lane, (tile_budget_bytes // (sub * elem_bytes)) // lane * lane)
        tc = min(tc, pl.cdiv(HW, lane) * lane)
        tr = sub
    else:
        tc = HW
        tr = max(sub, (tile_budget_bytes // (HW * elem_bytes)) // sub * sub)
        tr = min(tr, pl.cdiv(rows, sub) * sub)
        # Keep >= 4 row blocks when the problem is big enough, so the DMA
        # pipeline has steps to overlap and both v7x TensorCores get blocks.
        min_blocks = 4
        if rows > min_blocks * sub:
            tr = min(tr, pl.cdiv(pl.cdiv(rows, min_blocks), sub) * sub)

    nrb = pl.cdiv(rows, tr)
    ncb = pl.cdiv(HW, tc)
    mask_rows = (rows % tr) != 0
    mask_cols = (HW % tc) != 0

    kernel = functools.partial(_joints_mse_partial_kernel,
                               rows=rows, hw=HW,
                               use_target_weight=use_target_weight,
                               mask_rows=mask_rows, mask_cols=mask_cols)

    in_specs = [
        pl.BlockSpec((tr, tc), lambda i, j: (i, j)),
        pl.BlockSpec((tr, tc), lambda i, j: (i, j)),
    ]
    args = [pred, gt]
    if use_target_weight:
        w = target_weight.reshape(rows, 1)
        in_specs.append(pl.BlockSpec((tr, 1), lambda i, j: (i, 0)))
        args.append(w)

    bytes_accessed = 2 * rows * HW * elem_bytes + nrb * ncb * 4
    flops = 3 * rows * HW
    if use_target_weight:
        bytes_accessed += rows * target_weight.dtype.itemsize
        flops += rows * HW

    partials = pl.pallas_call(
        kernel,
        out_shape=jax.ShapeDtypeStruct((nrb, ncb), jnp.float32),
        grid_spec=pltpu.PrefetchScalarGridSpec(
            num_scalar_prefetch=0,
            grid=(nrb, ncb),
            in_specs=in_specs,
            # Each block writes its own partial -> no cross-step dependency,
            # so both grid axes are "parallel" (megacore-shardable on v7x).
            out_specs=pl.BlockSpec((1, 1), lambda i, j: (i, j),
                                   memory_space=pltpu.SMEM),
        ),
        compiler_params=pltpu.CompilerParams(
            dimension_semantics=("parallel", "parallel"),
            vmem_limit_bytes=40 << 20,
        ),
        cost_estimate=pl.CostEstimate(flops=flops, transcendentals=0,
                                      bytes_accessed=bytes_accessed),
    )(*args)

    scale = 0.5 / (B * HW * J)
    return jnp.sum(partials) * jnp.float32(scale)


def _reference_loss(output, target, target_weight, use_target_weight):
    """Pure-JAX replica of the PyTorch forward for verification."""
    B, J, H, W = output.shape
    pred = output.reshape(B, J, H * W).astype(jnp.float32)
    gt = target.reshape(B, J, H * W).astype(jnp.float32)
    loss = 0.0
    for i in range(J):
        p = pred[:, i, :]
        g = gt[:, i, :]
        if use_target_weight:
            wi = target_weight[:, i].astype(jnp.float32)  # (B, 1)
            p = p * wi
            g = g * wi
        loss += 0.5 * jnp.mean((p - g) ** 2)
    return loss / J


if __name__ == "__main__":
    key = jax.random.PRNGKey(0)

    # (B, J, H, W, tile_budget_bytes) — second case exercises the ragged row
    # tail mask; third forces column tiling + lane/sublane tail masks.
    cases = [
        (2, 4, 16, 16, 4 << 20),
        (2, 3, 16, 16, 4 << 20),
        (2, 3, 15, 15, 4 << 10),
    ]
    for (B, J, H, W, budget) in cases:
        key, k1, k2, k3 = jax.random.split(key, 4)
        output = jax.random.normal(k1, (B, J, H, W), dtype=jnp.float32)
        target = jax.random.normal(k2, (B, J, H, W), dtype=jnp.float32)
        target_weight = jax.random.uniform(k3, (B, J, 1), dtype=jnp.float32)

        for use_target_weight in (True, False):
            loss = joints_mse_loss(output, target, target_weight,
                                   use_target_weight=use_target_weight,
                                   tile_budget_bytes=budget)
            loss = jax.block_until_ready(loss)
            ref = _reference_loss(output, target, target_weight,
                                  use_target_weight)
            assert jnp.allclose(loss, ref, rtol=1e-5, atol=1e-6), (
                (B, J, H, W), use_target_weight, loss, ref)

    print("KERNEL_OK")
</pallas_src>

<mosaic_0001>
module attributes {stable_mosaic.version = 11 : i64} {
  func.func @_joints_mse_partial_kernel(%arg0: i32, %arg1: i32, %arg2: memref<8x256xf32, #tpu.memory_space<vmem>>, %arg3: memref<8x256xf32, #tpu.memory_space<vmem>>, %arg4: memref<8x1xf32, #tpu.memory_space<vmem>>, %arg5: memref<1x1xf32, #tpu.memory_space<smem>>) attributes {dimension_semantics = [#tpu.dimension_semantics<parallel>, #tpu.dimension_semantics<parallel>], iteration_bounds = array<i64: 1, 1>, scalar_prefetch = 0 : i64, scratch_operands = 0 : i64, tpu.core_type = #tpu.core_type<tc>, window_params = [{transform_indices = @transform_0, window_bounds = array<i64: 8, 256>}, {transform_indices = @transform_1, window_bounds = array<i64: 8, 256>}, {transform_indices = @transform_2, window_bounds = array<i64: 8, 1>}, {transform_indices = @transform_3, window_bounds = array<i64: 1, 1>}]} {
    %c0 = arith.constant 0 : index
    %c0_0 = arith.constant 0 : index
    %0 = vector.load %arg2[%c0, %c0_0] : memref<8x256xf32, #tpu.memory_space<vmem>>, vector<8x256xf32>
    %c0_1 = arith.constant 0 : index
    %c0_2 = arith.constant 0 : index
    %1 = vector.load %arg3[%c0_1, %c0_2] : memref<8x256xf32, #tpu.memory_space<vmem>>, vector<8x256xf32>
    %2 = arith.subf %0, %1 : vector<8x256xf32>
    %c0_3 = arith.constant 0 : index
    %c0_4 = arith.constant 0 : index
    %3 = vector.load %arg4[%c0_3, %c0_4] : memref<8x1xf32, #tpu.memory_space<vmem>>, vector<8x1xf32>
    %4 = vector.broadcast %3 : vector<8x1xf32> to vector<8x256xf32>
    %5 = arith.mulf %2, %4 : vector<8x256xf32>
    %6 = arith.mulf %5, %5 : vector<8x256xf32>
    %7 = vector.shape_cast %6 : vector<8x256xf32> to vector<1x8x256xf32>
    %cst = arith.constant dense<0.000000e+00> : vector<1xf32>
    %8 = vector.multi_reduction <add>, %7, %cst [1, 2] : vector<1x8x256xf32> to vector<1xf32>
    %9 = vector.shape_cast %8 : vector<1xf32> to vector<1x1x1xf32>
    %10 = vector.extract %9[0, 0, 0] : f32 from vector<1x1x1xf32>
    %c0_5 = arith.constant 0 : index
    %c0_6 = arith.constant 0 : index
    %11 = memref.load %arg5[%c0_5, %c0_6] : memref<1x1xf32, #tpu.memory_space<smem>>
    memref.store %10, %arg5[%c0_5, %c0_6] : memref<1x1xf32, #tpu.memory_space<smem>>
    return
  }
  func.func @transform_0(%arg0: i32, %arg1: i32) -> (i32, i32) {
    %c0_i32 = arith.constant 0 : i32
    return %arg0, %arg1 : i32, i32
  }
  func.func @transform_1(%arg0: i32, %arg1: i32) -> (i32, i32) {
    %c0_i32 = arith.constant 0 : i32
    return %arg0, %arg1 : i32, i32
  }
  func.func @transform_2(%arg0: i32, %arg1: i32) -> (i32, i32) {
    %c0_i32 = arith.constant 0 : i32
    %c0_i32_0 = arith.constant 0 : i32
    return %arg0, %c0_i32 : i32, i32
  }
  func.func @transform_3(%arg0: i32, %arg1: i32) -> (i32, i32) {
    %c0_i32 = arith.constant 0 : i32
    return %arg0, %arg1 : i32, i32
  }
}

</mosaic_0001>

<llo_original>
// kernel: tpu_custom_call.1
$region0: #{tpu_custom_call.1}
  #allocation0 [shape = 'u32[]', space=smem, size = 0x4, offset = 0x4, fixed_abs, tag = 'smem constant byte address 0x4 - core index']
  #allocation1 [shape = 'u32[144,128]{1,0:T(1,128)}', space=vmem, size = 0x12000, scoped, tag = 'internal scratch']
  %s0 = inlined_call_operand.hbm [shape: f32[8,256], index: 0, kind: input, shape index: {}]
  %s1 = inlined_call_operand.hbm [shape: f32[8,256], index: 1, kind: input, shape index: {}]
  %s2 = inlined_call_operand.vmem [shape: f32[8,1], index: 2, kind: input, shape index: {}]
  %s3 = inlined_call_operand.hbm [shape: f32[1,1], index: 3, kind: output, shape index: {}]
  %s4 = sld [smem:[#allocation0]]
  $region30: #{tpu_custom_call.1} parent=0
    _
  %s6 = ssub.s32 1, %s4
  %s7 = scalar_select 0, %s6, %s4
  $region1: #{tpu_custom_call.1} parent=0
    #allocation2 [shape = 'u8[8192]{0}', space=vmem, size = 0x2000, scoped, tag = 'input window, operand 0, single buffered']
    #allocation3 [shape = 's32[1]{0}', space=sflag, size = 0x4, scoped, tag = 'scoped memory for tpu_custom_call.1']
    #allocation4 [shape = 's32[1]{0}', space=sflag, size = 0x4, scoped, tag = 'scoped memory for tpu_custom_call.1']
    #allocation5 [shape = 'u8[8192]{0}', space=vmem, size = 0x2000, scoped, tag = 'input window, operand 1, single buffered']
    #allocation6 [shape = 's32[1]{0}', space=sflag, size = 0x4, scoped, tag = 'scoped memory for tpu_custom_call.1']
    #allocation7 [shape = 'u8[512]{0}', space=smem, size = 0x200, scoped, tag = 'output window, operand 0, single buffered']
    %8 = vsyncpa [#allocation3], 0
    %9 = vsyncpa [#allocation6], 0
    %10 = vsyncpa [#allocation4], 0
    // Predicated region
    $region2: #{tpu_custom_call.1} parent=1 // pred_check
      _
    $region3: #{tpu_custom_call.1} parent=1 // pred_check_branch
      %12 = sbr.rel (0) target = $region5
    $region4: #{tpu_custom_call.1} parent=1 // pred_region
      %s14 = ssub.s32 256, 256
      %15 = vsyncadd [#allocation3], %s14
      %s17 = sshll.u32 [#allocation2], 4
      %s18 = int_to_ptr.vmem [resolvable:$true] %s17
      %20 = dma.hbm_to_vmem [thread:$0]  %s0, 256, %s18, [#allocation3]
    $region5: #{tpu_custom_call.1} parent=1 // pred_fallthru
      _
    // Predicated region
    $region6: #{tpu_custom_call.1} parent=1 // pred_check
      _
    $region7: #{tpu_custom_call.1} parent=1 // pred_check_branch
      %22 = sbr.rel (0) target = $region9
    $region8: #{tpu_custom_call.1} parent=1 // pred_region
      %s24 = ssub.s32 256, 256
      %25 = vsyncadd [#allocation6], %s24
      %s27 = sshll.u32 [#allocation5], 4
      %s28 = int_to_ptr.vmem [resolvable:$true] %s27
      %30 = dma.hbm_to_vmem [thread:$0]  %s1, 256, %s28, [#allocation6]
    $region9: #{tpu_custom_call.1} parent=1 // pred_fallthru
      _
    // Predicated region
    $region10: #{tpu_custom_call.1} parent=1 // pred_check
      _
    $region11: #{tpu_custom_call.1} parent=1 // pred_check_branch
      %32 = sbr.rel (0) target = $region13
    $region12: #{tpu_custom_call.1} parent=1 // pred_region
      _
    $region13: #{tpu_custom_call.1} parent=1 // pred_fallthru
      _
    // Predicated region
    $region14: #{tpu_custom_call.1} parent=1 // pred_check
      _
    $region15: #{tpu_custom_call.1} parent=1 // pred_check_branch
      %34 = sbr.rel (0) target = $region17
    $region16: #{tpu_custom_call.1} parent=1 // pred_region
      %35 = dma.done [#allocation3], 256
    $region17: #{tpu_custom_call.1} parent=1 // pred_fallthru
      _
    // Predicated region
    $region18: #{tpu_custom_call.1} parent=1 // pred_check
      _
    $region19: #{tpu_custom_call.1} parent=1 // pred_check_branch
      %37 = sbr.rel (0) target = $region21
    $region20: #{tpu_custom_call.1} parent=1 // pred_region
      %38 = dma.done [#allocation6], 256
    $region21: #{tpu_custom_call.1} parent=1 // pred_fallthru
      _
    %v39 = vld [vmem:[#allocation2] sm:$0xff]
    %v40 = vld [vmem:[#allocation2 + $0x8] sm:$0xff]
    %v41 = vld [vmem:[#allocation5] sm:$0xff]
    %v42 = vld [vmem:[#allocation5 + $0x8] sm:$0xff]
    %v43 = vsub.f32 %v39, %v41
    %v44 = vsub.f32 %v40, %v42
    %v45 = vld [vmem:[%s2] sm:$0xff]
    %47 = vset.pattern.permute.xlu0 0
    %48 = vperm.xlu0 %47, %v45
    %v49 = vpop.permute.xlu0 %48
    %v51 = vmul.f32 %v43, %v49
    %v52 = vmul.f32 %v44, %v49
    %v53 = vmul.f32 %v51, %v51
    %v54 = vmul.f32 %v52, %v52
    %v55 = vadd.f32 %v53, %v54
    %56 = vadd.xlane.f32.xlu0 %v55
    %v57 = vpop.xlane.xlu0 %56
    %v58 = vrot.slane %v57, 4
    %v59 = vadd.f32 %v57, %v58
    %v60 = vrot.slane %v59, 2
    %v61 = vadd.f32 %v59, %v60
    %v62 = vrot.slane %v61, 1
    %v63 = vadd.f32 %v61, %v62
    %s64 = vtos %v63
    %s65 = scalar_lea.smem [#allocation7], 0
    %66 = sst [smem:[%s65]] %s64
    // Predicated region
    $region22: #{tpu_custom_call.1} parent=1 // pred_check
      _
    $region23: #{tpu_custom_call.1} parent=1 // pred_check_branch
      %68 = sbr.rel (0) target = $region25
    $region24: #{tpu_custom_call.1} parent=1 // pred_region
      %s70 = ssub.s32 16, 16
      %71 = vsyncadd [#allocation4], %s70
      %74 = dma.smem_to_hbm [#allocation7], 16, %s3, [#allocation4]
    $region25: #{tpu_custom_call.1} parent=1 // pred_fallthru
      _
    // Predicated region
    $region26: #{tpu_custom_call.1} parent=1 // pred_check
      _
    $region27: #{tpu_custom_call.1} parent=1 // pred_check_branch
      %76 = sbr.rel (0) target = $region29
    $region28: #{tpu_custom_call.1} parent=1 // pred_region
      %77 = dma.done [#allocation4], 16
    $region29: #{tpu_custom_call.1} parent=1 // pred_fallthru
      _
    %78 = sfence
    %79 = vsyncpa [#allocation3], 1
    %80 = vsyncpa [#allocation6], 1
    %81 = vsyncpa [#allocation4], 1

</llo_original>
